<compile_context>
chip_gen: v7x
topology: tpu7x:2x2x1
jax: 0.10.0
libtpu: 0.0.40
codegen_flags: <defaults>
</compile_context>

<pallas_src>
import jax
import jax.numpy as jnp
from jax.experimental import pallas as pl
from jax.experimental.pallas import tpu as pltpu


def _make_kernel(C, Cout, H, W):
    Wp = W + 2            # padded row stride
    HP = H * Wp           # flattened output length (includes 2 junk cols/row)

    def kernel(x_ref, dww_ref, dwb_ref, pww_ref, pwb_ref, o_ref):
        # x_ref  : (1, C, (H+3)*(W+2))  zero-padded, spatially-flattened input
        # dww_ref: (9, C, 1)            depthwise weights, tap-major
        # dwb_ref: (C, 1)               depthwise bias
        # pww_ref: (Cout, C)            pointwise weights
        # pwb_ref: (Cout, 1)            pointwise bias
        # o_ref  : (1, Cout, H*(W+2))   flat output (junk cols sliced outside)

        # --- depthwise 3x3 (padding already baked into the layout) --------
        # Each tap is a constant-offset slice of the ref; the per-channel
        # weight (C, 1) broadcasts across the lane-dense spatial axis, so
        # every MAC is a pure per-lane VPU op.
        acc = jnp.zeros((C, HP), jnp.float32)
        for ky in range(3):
            for kx in range(3):
                t = ky * 3 + kx
                off = ky * Wp + kx
                acc = acc + dww_ref[t] * x_ref[0, :, off:off + HP]
        acc = acc + dwb_ref[...]                                  # (C, 1) bcast

        # --- pointwise 1x1 conv: contraction over C ------------------------
        # TODO(synk): cast operands to bf16 on v6e/v7x when the accuracy
        # budget allows (2x MXU rate); kept f32 to match the f32 reference.
        out = jnp.dot(pww_ref[...], acc,
                      preferred_element_type=jnp.float32)         # (Cout, HP)
        o_ref[0] = (out + pwb_ref[...]).astype(o_ref.dtype)

    return kernel


def depthwise_separable_conv(x, dw_w, dw_b, pw_w, pw_b):
    """x: (N, C, H, W) f32; params in PyTorch Conv2d shapes. Returns (N, Cout, H, W)."""
    N, C, H, W = x.shape
    Cout = pw_w.shape[0]
    Wp = W + 2
    HP = H * Wp                      # per-image flattened output length
    HPP = (H + 3) * Wp               # per-image flattened padded input length

    # One producer pass: zero-pad (1 top, 2 bottom, 1 left, 1 right) and
    # flatten the spatial axes.  The extra bottom row keeps every tap slice
    # in-bounds; the reshape itself is layout-free.
    x_flat = jnp.pad(x, ((0, 0), (0, 0), (1, 2), (1, 1))).reshape(N, C, HPP)

    # Parameters pre-shaped so the kernel never gathers / transposes them.
    dw_w_k = jnp.transpose(dw_w.reshape(C, 9), (1, 0)).reshape(9, C, 1)
    dw_b_k = dw_b.reshape(C, 1)
    pw_w_k = pw_w.reshape(Cout, C)
    pw_b_k = pw_b.reshape(Cout, 1)

    kernel = _make_kernel(C, Cout, H, W)

    # TODO(synk): for very large C*H*W add a spatial row-block grid axis
    # (with a 2-row halo) so the per-step working set fits v7x's 64 MiB VMEM
    # and feeds both TensorCores even when N is small.
    out_flat = pl.pallas_call(
        kernel,
        out_shape=jax.ShapeDtypeStruct((N, Cout, HP), jnp.float32),
        grid=(N,),
        in_specs=[
            pl.BlockSpec((1, C, HPP), lambda n: (n, 0, 0)),
            pl.BlockSpec((9, C, 1), lambda n: (0, 0, 0)),
            pl.BlockSpec((C, 1), lambda n: (0, 0)),
            pl.BlockSpec((Cout, C), lambda n: (0, 0)),
            pl.BlockSpec((Cout, 1), lambda n: (0, 0)),
        ],
        out_specs=pl.BlockSpec((1, Cout, HP), lambda n: (n, 0, 0)),
        compiler_params=pltpu.CompilerParams(
            dimension_semantics=("parallel",)),
    )(x_flat, dw_w_k, dw_b_k, pw_w_k, pw_b_k)

    # Drop the 2 junk columns per row and restore (N, Cout, H, W) in plain JAX.
    return out_flat.reshape(N, Cout, H, Wp)[:, :, :, :W]


def _reference(x, dw_w, dw_b, pw_w, pw_b):
    """Pure-JAX reference matching PyTorch Conv2d semantics."""
    C = x.shape[1]
    dw = jax.lax.conv_general_dilated(
        x, dw_w, window_strides=(1, 1), padding=((1, 1), (1, 1)),
        dimension_numbers=("NCHW", "OIHW", "NCHW"), feature_group_count=C)
    dw = dw + dw_b[None, :, None, None]
    pw = jax.lax.conv_general_dilated(
        dw, pw_w, window_strides=(1, 1), padding=((0, 0), (0, 0)),
        dimension_numbers=("NCHW", "OIHW", "NCHW"))
    return pw + pw_b[None, :, None, None]


if __name__ == "__main__":
    N, C, Cout, H, W = 2, 4, 8, 16, 16

    key = jax.random.PRNGKey(0)
    k1, k2, k3, k4, k5 = jax.random.split(key, 5)
    x = jax.random.normal(k1, (N, C, H, W), jnp.float32)
    # parameter shapes per nn.Conv2d:
    dw_w = 0.1 * jax.random.normal(k2, (C, 1, 3, 3), jnp.float32)     # depthwise weight
    dw_b = 0.1 * jax.random.normal(k3, (C,), jnp.float32)             # depthwise bias
    pw_w = 0.1 * jax.random.normal(k4, (Cout, C, 1, 1), jnp.float32)  # pointwise weight
    pw_b = 0.1 * jax.random.normal(k5, (Cout,), jnp.float32)          # pointwise bias

    out = depthwise_separable_conv(x, dw_w, dw_b, pw_w, pw_b)
    out = jax.block_until_ready(out)

    ref = _reference(x, dw_w, dw_b, pw_w, pw_b)
    assert out.shape == (N, Cout, H, W)
    assert jnp.allclose(out, ref, atol=1e-4, rtol=1e-4), "mismatch vs reference"

    print("KERNEL_OK")
</pallas_src>

<mosaic_0001>
module attributes {stable_mosaic.version = 11 : i64} {
  func.func @kernel(%arg0: i32, %arg1: memref<1x4x342xf32, #tpu.memory_space<vmem>>, %arg2: memref<9x4x1xf32, #tpu.memory_space<vmem>>, %arg3: memref<4x1xf32, #tpu.memory_space<vmem>>, %arg4: memref<8x4xf32, #tpu.memory_space<vmem>>, %arg5: memref<8x1xf32, #tpu.memory_space<vmem>>, %arg6: memref<1x8x288xf32, #tpu.memory_space<vmem>>) attributes {dimension_semantics = [#tpu.dimension_semantics<parallel>], iteration_bounds = array<i64: 2>, scalar_prefetch = 0 : i64, scratch_operands = 0 : i64, tpu.core_type = #tpu.core_type<tc>, window_params = [{transform_indices = @transform_0, window_bounds = array<i64: 1, 4, 342>}, {pipeline_mode = #tpu.pipeline_mode<synchronous>, transform_indices = @transform_1, window_bounds = array<i64: 9, 4, 1>}, {pipeline_mode = #tpu.pipeline_mode<synchronous>, transform_indices = @transform_2, window_bounds = array<i64: 4, 1>}, {pipeline_mode = #tpu.pipeline_mode<synchronous>, transform_indices = @transform_3, window_bounds = array<i64: 8, 4>}, {pipeline_mode = #tpu.pipeline_mode<synchronous>, transform_indices = @transform_4, window_bounds = array<i64: 8, 1>}, {transform_indices = @transform_5, window_bounds = array<i64: 1, 8, 288>}]} {
    %cst = arith.constant 0.000000e+00 : f32
    %0 = vector.broadcast %cst : f32 to vector<4x288xf32>
    %c0 = arith.constant 0 : index
    %c0_0 = arith.constant 0 : index
    %c0_1 = arith.constant 0 : index
    %1 = vector.load %arg2[%c0, %c0_0, %c0_1] : memref<9x4x1xf32, #tpu.memory_space<vmem>>, vector<1x4x1xf32>
    %2 = vector.shape_cast %1 : vector<1x4x1xf32> to vector<4x1xf32>
    %c0_2 = arith.constant 0 : index
    %c0_3 = arith.constant 0 : index
    %c0_4 = arith.constant 0 : index
    %3 = vector.load %arg1[%c0_2, %c0_3, %c0_4] : memref<1x4x342xf32, #tpu.memory_space<vmem>>, vector<1x4x288xf32>
    %4 = vector.shape_cast %3 : vector<1x4x288xf32> to vector<4x288xf32>
    %5 = vector.broadcast %2 : vector<4x1xf32> to vector<4x288xf32>
    %6 = arith.mulf %5, %4 : vector<4x288xf32>
    %7 = arith.addf %0, %6 : vector<4x288xf32>
    %c1 = arith.constant 1 : index
    %c0_5 = arith.constant 0 : index
    %c0_6 = arith.constant 0 : index
    %8 = vector.load %arg2[%c1, %c0_5, %c0_6] : memref<9x4x1xf32, #tpu.memory_space<vmem>>, vector<1x4x1xf32>
    %9 = vector.shape_cast %8 : vector<1x4x1xf32> to vector<4x1xf32>
    %c0_7 = arith.constant 0 : index
    %c0_8 = arith.constant 0 : index
    %c1_9 = arith.constant 1 : index
    %10 = vector.load %arg1[%c0_7, %c0_8, %c1_9] : memref<1x4x342xf32, #tpu.memory_space<vmem>>, vector<1x4x288xf32>
    %11 = vector.shape_cast %10 : vector<1x4x288xf32> to vector<4x288xf32>
    %12 = vector.broadcast %9 : vector<4x1xf32> to vector<4x288xf32>
    %13 = arith.mulf %12, %11 : vector<4x288xf32>
    %14 = arith.addf %7, %13 : vector<4x288xf32>
    %c2 = arith.constant 2 : index
    %c0_10 = arith.constant 0 : index
    %c0_11 = arith.constant 0 : index
    %15 = vector.load %arg2[%c2, %c0_10, %c0_11] : memref<9x4x1xf32, #tpu.memory_space<vmem>>, vector<1x4x1xf32>
    %16 = vector.shape_cast %15 : vector<1x4x1xf32> to vector<4x1xf32>
    %c0_12 = arith.constant 0 : index
    %c0_13 = arith.constant 0 : index
    %c2_14 = arith.constant 2 : index
    %17 = vector.load %arg1[%c0_12, %c0_13, %c2_14] : memref<1x4x342xf32, #tpu.memory_space<vmem>>, vector<1x4x288xf32>
    %18 = vector.shape_cast %17 : vector<1x4x288xf32> to vector<4x288xf32>
    %19 = vector.broadcast %16 : vector<4x1xf32> to vector<4x288xf32>
    %20 = arith.mulf %19, %18 : vector<4x288xf32>
    %21 = arith.addf %14, %20 : vector<4x288xf32>
    %c3 = arith.constant 3 : index
    %c0_15 = arith.constant 0 : index
    %c0_16 = arith.constant 0 : index
    %22 = vector.load %arg2[%c3, %c0_15, %c0_16] : memref<9x4x1xf32, #tpu.memory_space<vmem>>, vector<1x4x1xf32>
    %23 = vector.shape_cast %22 : vector<1x4x1xf32> to vector<4x1xf32>
    %c0_17 = arith.constant 0 : index
    %c0_18 = arith.constant 0 : index
    %c18 = arith.constant 18 : index
    %24 = vector.load %arg1[%c0_17, %c0_18, %c18] : memref<1x4x342xf32, #tpu.memory_space<vmem>>, vector<1x4x288xf32>
    %25 = vector.shape_cast %24 : vector<1x4x288xf32> to vector<4x288xf32>
    %26 = vector.broadcast %23 : vector<4x1xf32> to vector<4x288xf32>
    %27 = arith.mulf %26, %25 : vector<4x288xf32>
    %28 = arith.addf %21, %27 : vector<4x288xf32>
    %c4 = arith.constant 4 : index
    %c0_19 = arith.constant 0 : index
    %c0_20 = arith.constant 0 : index
    %29 = vector.load %arg2[%c4, %c0_19, %c0_20] : memref<9x4x1xf32, #tpu.memory_space<vmem>>, vector<1x4x1xf32>
    %30 = vector.shape_cast %29 : vector<1x4x1xf32> to vector<4x1xf32>
    %c0_21 = arith.constant 0 : index
    %c0_22 = arith.constant 0 : index
    %c19 = arith.constant 19 : index
    %31 = vector.load %arg1[%c0_21, %c0_22, %c19] : memref<1x4x342xf32, #tpu.memory_space<vmem>>, vector<1x4x288xf32>
    %32 = vector.shape_cast %31 : vector<1x4x288xf32> to vector<4x288xf32>
    %33 = vector.broadcast %30 : vector<4x1xf32> to vector<4x288xf32>
    %34 = arith.mulf %33, %32 : vector<4x288xf32>
    %35 = arith.addf %28, %34 : vector<4x288xf32>
    %c5 = arith.constant 5 : index
    %c0_23 = arith.constant 0 : index
    %c0_24 = arith.constant 0 : index
    %36 = vector.load %arg2[%c5, %c0_23, %c0_24] : memref<9x4x1xf32, #tpu.memory_space<vmem>>, vector<1x4x1xf32>
    %37 = vector.shape_cast %36 : vector<1x4x1xf32> to vector<4x1xf32>
    %c0_25 = arith.constant 0 : index
    %c0_26 = arith.constant 0 : index
    %c20 = arith.constant 20 : index
    %38 = vector.load %arg1[%c0_25, %c0_26, %c20] : memref<1x4x342xf32, #tpu.memory_space<vmem>>, vector<1x4x288xf32>
    %39 = vector.shape_cast %38 : vector<1x4x288xf32> to vector<4x288xf32>
    %40 = vector.broadcast %37 : vector<4x1xf32> to vector<4x288xf32>
    %41 = arith.mulf %40, %39 : vector<4x288xf32>
    %42 = arith.addf %35, %41 : vector<4x288xf32>
    %c6 = arith.constant 6 : index
    %c0_27 = arith.constant 0 : index
    %c0_28 = arith.constant 0 : index
    %43 = vector.load %arg2[%c6, %c0_27, %c0_28] : memref<9x4x1xf32, #tpu.memory_space<vmem>>, vector<1x4x1xf32>
    %44 = vector.shape_cast %43 : vector<1x4x1xf32> to vector<4x1xf32>
    %c0_29 = arith.constant 0 : index
    %c0_30 = arith.constant 0 : index
    %c36 = arith.constant 36 : index
    %45 = vector.load %arg1[%c0_29, %c0_30, %c36] : memref<1x4x342xf32, #tpu.memory_space<vmem>>, vector<1x4x288xf32>
    %46 = vector.shape_cast %45 : vector<1x4x288xf32> to vector<4x288xf32>
    %47 = vector.broadcast %44 : vector<4x1xf32> to vector<4x288xf32>
    %48 = arith.mulf %47, %46 : vector<4x288xf32>
    %49 = arith.addf %42, %48 : vector<4x288xf32>
    %c7 = arith.constant 7 : index
    %c0_31 = arith.constant 0 : index
    %c0_32 = arith.constant 0 : index
    %50 = vector.load %arg2[%c7, %c0_31, %c0_32] : memref<9x4x1xf32, #tpu.memory_space<vmem>>, vector<1x4x1xf32>
    %51 = vector.shape_cast %50 : vector<1x4x1xf32> to vector<4x1xf32>
    %c0_33 = arith.constant 0 : index
    %c0_34 = arith.constant 0 : index
    %c37 = arith.constant 37 : index
    %52 = vector.load %arg1[%c0_33, %c0_34, %c37] : memref<1x4x342xf32, #tpu.memory_space<vmem>>, vector<1x4x288xf32>
    %53 = vector.shape_cast %52 : vector<1x4x288xf32> to vector<4x288xf32>
    %54 = vector.broadcast %51 : vector<4x1xf32> to vector<4x288xf32>
    %55 = arith.mulf %54, %53 : vector<4x288xf32>
    %56 = arith.addf %49, %55 : vector<4x288xf32>
    %c8 = arith.constant 8 : index
    %c0_35 = arith.constant 0 : index
    %c0_36 = arith.constant 0 : index
    %57 = vector.load %arg2[%c8, %c0_35, %c0_36] : memref<9x4x1xf32, #tpu.memory_space<vmem>>, vector<1x4x1xf32>
    %58 = vector.shape_cast %57 : vector<1x4x1xf32> to vector<4x1xf32>
    %c0_37 = arith.constant 0 : index
    %c0_38 = arith.constant 0 : index
    %c38 = arith.constant 38 : index
    %59 = vector.load %arg1[%c0_37, %c0_38, %c38] : memref<1x4x342xf32, #tpu.memory_space<vmem>>, vector<1x4x288xf32>
    %60 = vector.shape_cast %59 : vector<1x4x288xf32> to vector<4x288xf32>
    %61 = vector.broadcast %58 : vector<4x1xf32> to vector<4x288xf32>
    %62 = arith.mulf %61, %60 : vector<4x288xf32>
    %63 = arith.addf %56, %62 : vector<4x288xf32>
    %c0_39 = arith.constant 0 : index
    %c0_40 = arith.constant 0 : index
    %64 = vector.load %arg3[%c0_39, %c0_40] : memref<4x1xf32, #tpu.memory_space<vmem>>, vector<4x1xf32>
    %65 = vector.broadcast %64 : vector<4x1xf32> to vector<4x288xf32>
    %66 = arith.addf %63, %65 : vector<4x288xf32>
    %c0_41 = arith.constant 0 : index
    %c0_42 = arith.constant 0 : index
    %67 = vector.load %arg4[%c0_41, %c0_42] : memref<8x4xf32, #tpu.memory_space<vmem>>, vector<8x4xf32>
    %cst_43 = arith.constant dense<0.000000e+00> : vector<8x288xf32>
    %68 = tpu.matmul %67, %66, %cst_43 {dimension_numbers = #tpu.dot_dimension_numbers<[1], [0], [0], [1], [0, 0, 1, 1], [], []>} : vector<8x4xf32>, vector<4x288xf32>, vector<8x288xf32> -> vector<8x288xf32>
    %c0_44 = arith.constant 0 : index
    %c0_45 = arith.constant 0 : index
    %69 = vector.load %arg5[%c0_44, %c0_45] : memref<8x1xf32, #tpu.memory_space<vmem>>, vector<8x1xf32>
    %70 = vector.broadcast %69 : vector<8x1xf32> to vector<8x288xf32>
    %71 = arith.addf %68, %70 : vector<8x288xf32>
    %c0_46 = arith.constant 0 : index
    %c0_47 = arith.constant 0 : index
    %c0_48 = arith.constant 0 : index
    %72 = vector.load %arg6[%c0_46, %c0_47, %c0_48] : memref<1x8x288xf32, #tpu.memory_space<vmem>>, vector<1x8x288xf32>
    %73 = vector.shape_cast %72 : vector<1x8x288xf32> to vector<8x288xf32>
    %74 = vector.shape_cast %71 : vector<8x288xf32> to vector<1x8x288xf32>
    tpu.vector_store %arg6[%c0_46, %c0_47, %c0_48], %74 {strides = array<i32>} : memref<1x8x288xf32, #tpu.memory_space<vmem>>, vector<1x8x288xf32>,
    return
  }
  func.func @transform_0(%arg0: i32) -> (i32, i32, i32) {
    %c0_i32 = arith.constant 0 : i32
    %c0_i32_0 = arith.constant 0 : i32
    %c0_i32_1 = arith.constant 0 : i32
    return %arg0, %c0_i32, %c0_i32_0 : i32, i32, i32
  }
  func.func @transform_1(%arg0: i32) -> (i32, i32, i32) {
    %c0_i32 = arith.constant 0 : i32
    %c0_i32_0 = arith.constant 0 : i32
    %c0_i32_1 = arith.constant 0 : i32
    %c0_i32_2 = arith.constant 0 : i32
    return %c0_i32, %c0_i32_0, %c0_i32_1 : i32, i32, i32
  }
  func.func @transform_2(%arg0: i32) -> (i32, i32) {
    %c0_i32 = arith.constant 0 : i32
    %c0_i32_0 = arith.constant 0 : i32
    %c0_i32_1 = arith.constant 0 : i32
    return %c0_i32, %c0_i32_0 : i32, i32
  }
  func.func @transform_3(%arg0: i32) -> (i32, i32) {
    %c0_i32 = arith.constant 0 : i32
    %c0_i32_0 = arith.constant 0 : i32
    %c0_i32_1 = arith.constant 0 : i32
    return %c0_i32, %c0_i32_0 : i32, i32
  }
  func.func @transform_4(%arg0: i32) -> (i32, i32) {
    %c0_i32 = arith.constant 0 : i32
    %c0_i32_0 = arith.constant 0 : i32
    %c0_i32_1 = arith.constant 0 : i32
    return %c0_i32, %c0_i32_0 : i32, i32
  }
  func.func @transform_5(%arg0: i32) -> (i32, i32, i32) {
    %c0_i32 = arith.constant 0 : i32
    %c0_i32_0 = arith.constant 0 : i32
    %c0_i32_1 = arith.constant 0 : i32
    return %arg0, %c0_i32, %c0_i32_0 : i32, i32, i32
  }
}

</mosaic_0001>

<llo_original>
// kernel: tpu_custom_call.1
$region0: #{tpu_custom_call.1}
  #allocation0 [shape = 'u32[]', space=smem, size = 0x4, offset = 0x4, fixed_abs, tag = 'smem constant byte address 0x4 - core index']
  #allocation1 [shape = 'u32[144,128]{1,0:T(1,128)}', space=vmem, size = 0x12000, scoped, tag = 'internal scratch']
  %s0 = inlined_call_operand.vmem [shape: f32[2,4,342], index: 0, kind: input, shape index: {}]
  %s1 = inlined_call_operand.vmem [shape: f32[9,4,1], index: 1, kind: input, shape index: {}]
  %s2 = inlined_call_operand.vmem [shape: f32[4,1], index: 2, kind: input, shape index: {}]
  %s3 = inlined_call_operand.vmem [shape: f32[8,4], index: 3, kind: input, shape index: {}]
  %s4 = inlined_call_operand.vmem [shape: f32[8,1], index: 4, kind: input, shape index: {}]
  %s5 = inlined_call_operand.hbm [shape: f32[2,8,288], index: 5, kind: output, shape index: {}]
  %s6 = sld [smem:[#allocation0]]
  $region53: #{tpu_custom_call.1} parent=0
    _
  %s8 = ssub.s32 1, %s6
  %s9 = scalar_select 0, %s8, %s6
  $region1: #{tpu_custom_call.1} parent=0
    #allocation2 [shape = 'u8[24576]{0}', space=vmem, size = 0x6000, scoped, tag = 'output window, operand 0']
    #allocation3 [shape = 's32[2]{0}', space=sflag, size = 0x8, scoped, tag = 'scoped memory for tpu_custom_call.1']
    %10 = vsyncpa [#allocation3], 0
    %s11 = scalar_lea.sflag [#allocation3], 1
    %12 = vsyncpa %s11, 0
    loop: start=0, step=1, limit=4
    $region2: #{tpu_custom_call.1} parent=1 // loop_pre_header
      _
    $region3: #{tpu_custom_call.1} parent=1 // loop_header
      %s14 = sphi 0, %s18
      %p15 = scmp.ge.s32.totalorder %s14, 4
      %s24 = sphi 0, %s26
      %s27 = sphi 0, %s24
      %s28 = sphi 0, %s27
      %s44 = sphi 0, %s28
      %s48 = sphi 0, %s48
      %s50 = sphi 0, %s48
      %s51 = sphi 0, %s50
      %s65 = sphi 0, %s51
      %s69 = sphi 0, %s69
      %s71 = sphi 0, %s69
      %s72 = sphi 0, %s71
      %s86 = sphi 0, %s72
      %s90 = sphi 0, %s90
      %s92 = sphi 0, %s90
      %s93 = sphi 0, %s92
      %s107 = sphi 0, %s93
      %s111 = sphi 0, %s111
      %s113 = sphi 0, %s111
      %s114 = sphi 0, %s113
      %s128 = sphi 0, %s114
      %s134 = sphi 0, %s136
      %s137 = sphi 0, %s134
      %s138 = sphi 0, %s137
      %s154 = sphi 0, %s138
    $region4: #{tpu_custom_call.1} parent=1 // loop_header_branch
      %17 = sbr.rel (%p15) target = $region8
    $region5: #{tpu_custom_call.1} parent=1 // loop_body
      %s19 = ssub.s32 %s14, 1
      %s20 = ssub.s32 %s14, 2
      %s21 = sadd.s32 %s14, 1
      %s22 = ssub.s32 %s14, %s21
      %p23 = scmp.eq.s32.totalorder %s22, 0
      %s25 = sadd.s32 %s24, 1
      %s26 = scalar_select %p23, %s24, %s25
      %p29 = pneg %p23
      %p30 = scmp.eq.s32.totalorder %s14, 1
      %p31 = por %p29, %p30
      %p32 = scmp.ne.s32.totalorder %s24, %s27
      %p33 = scmp.eq.s32.totalorder %s14, 0
      %p34 = por %p32, %p33
      %p35 = scmp.ne.s32.totalorder %s24, %s27
      %p36 = scmp.eq.s32.totalorder %s19, 1
      %p37 = por %p35, %p36
      %p38 = scmp.ne.s32.totalorder %s27, %s28
      %p39 = scmp.eq.s32.totalorder %s19, 0
      %p40 = por %p38, %p39
      %p41 = scmp.ne.s32.totalorder %s27, %s28
      %p42 = scmp.eq.s32.totalorder %s20, 1
      %p43 = por %p41, %p42
      %p45 = scmp.ne.s32.totalorder %s28, %s44
      %p46 = scmp.eq.s32.totalorder %s20, 0
      %p47 = por %p45, %p46
      %s49 = sadd.s32 %s48, 1
      %p52 = scmp.eq.s32.totalorder %s14, 1
      %p53 = scmp.ne.s32.totalorder %s48, %s50
      %p54 = scmp.eq.s32.totalorder %s14, 0
      %p55 = por %p53, %p54
      %p56 = scmp.ne.s32.totalorder %s48, %s50
      %p57 = scmp.eq.s32.totalorder %s19, 1
      %p58 = por %p56, %p57
      %p59 = scmp.ne.s32.totalorder %s50, %s51
      %p60 = scmp.eq.s32.totalorder %s19, 0
      %p61 = por %p59, %p60
      %p62 = scmp.ne.s32.totalorder %s50, %s51
      %p63 = scmp.eq.s32.totalorder %s20, 1
      %p64 = por %p62, %p63
      %p66 = scmp.ne.s32.totalorder %s51, %s65
      %p67 = scmp.eq.s32.totalorder %s20, 0
      %p68 = por %p66, %p67
      %s70 = sadd.s32 %s69, 1
      %p73 = scmp.eq.s32.totalorder %s14, 1
      %p74 = scmp.ne.s32.totalorder %s69, %s71
      %p75 = scmp.eq.s32.totalorder %s14, 0
      %p76 = por %p74, %p75
      %p77 = scmp.ne.s32.totalorder %s69, %s71
      %p78 = scmp.eq.s32.totalorder %s19, 1
      %p79 = por %p77, %p78
      %p80 = scmp.ne.s32.totalorder %s71, %s72
      %p81 = scmp.eq.s32.totalorder %s19, 0
      %p82 = por %p80, %p81
      %p83 = scmp.ne.s32.totalorder %s71, %s72
      %p84 = scmp.eq.s32.totalorder %s20, 1
      %p85 = por %p83, %p84
      %p87 = scmp.ne.s32.totalorder %s72, %s86
      %p88 = scmp.eq.s32.totalorder %s20, 0
      %p89 = por %p87, %p88
      %s91 = sadd.s32 %s90, 1
      %p94 = scmp.eq.s32.totalorder %s14, 1
      %p95 = scmp.ne.s32.totalorder %s90, %s92
      %p96 = scmp.eq.s32.totalorder %s14, 0
      %p97 = por %p95, %p96
      %p98 = scmp.ne.s32.totalorder %s90, %s92
      %p99 = scmp.eq.s32.totalorder %s19, 1
      %p100 = por %p98, %p99
      %p101 = scmp.ne.s32.totalorder %s92, %s93
      %p102 = scmp.eq.s32.totalorder %s19, 0
      %p103 = por %p101, %p102
      %p104 = scmp.ne.s32.totalorder %s92, %s93
      %p105 = scmp.eq.s32.totalorder %s20, 1
      %p106 = por %p104, %p105
      %p108 = scmp.ne.s32.totalorder %s93, %s107
      %p109 = scmp.eq.s32.totalorder %s20, 0
      %p110 = por %p108, %p109
      %s112 = sadd.s32 %s111, 1
      %p115 = scmp.eq.s32.totalorder %s14, 1
      %p116 = scmp.ne.s32.totalorder %s111, %s113
      %p117 = scmp.eq.s32.totalorder %s14, 0
      %p118 = por %p116, %p117
      %p119 = scmp.ne.s32.totalorder %s111, %s113
      %p120 = scmp.eq.s32.totalorder %s19, 1
      %p121 = por %p119, %p120
      %p122 = scmp.ne.s32.totalorder %s113, %s114
      %p123 = scmp.eq.s32.totalorder %s19, 0
      %p124 = por %p122, %p123
      %p125 = scmp.ne.s32.totalorder %s113, %s114
      %p126 = scmp.eq.s32.totalorder %s20, 1
      %p127 = por %p125, %p126
      %p129 = scmp.ne.s32.totalorder %s114, %s128
      %p130 = scmp.eq.s32.totalorder %s20, 0
      %p131 = por %p129, %p130
      %s132 = ssub.s32 %s14, %s21
      %p133 = scmp.eq.s32.totalorder %s132, 0
      %s135 = sadd.s32 %s134, 1
      %s136 = scalar_select %p133, %s134, %s135
      %p139 = pneg %p133
      %p140 = scmp.eq.s32.totalorder %s14, 1
      %p141 = por %p139, %p140
      %p142 = scmp.ne.s32.totalorder %s134, %s137
      %p143 = scmp.eq.s32.totalorder %s14, 0
      %p144 = por %p142, %p143
      %p145 = scmp.ne.s32.totalorder %s134, %s137
      %p146 = scmp.eq.s32.totalorder %s19, 1
      %p147 = por %p145, %p146
      %p148 = scmp.ne.s32.totalorder %s137, %s138
      %p149 = scmp.eq.s32.totalorder %s19, 0
      %p150 = por %p148, %p149
      %p151 = scmp.ne.s32.totalorder %s137, %s138
      %p152 = scmp.eq.s32.totalorder %s20, 1
      %p153 = por %p151, %p152
      %p155 = scmp.ne.s32.totalorder %s138, %s154
      %p156 = scmp.eq.s32.totalorder %s20, 0
      %p157 = por %p155, %p156
      %p158 = scmp.le.s32.totalorder 1, %s14
      %p159 = scmp.lt.s32.totalorder %s14, 3
      %p160 = pnand %p158, %p159
      %p161 = pneg %p160
      // Predicated region
      $region9: #{tpu_custom_call.1} parent=5 // pred_check
        _
      $region10: #{tpu_custom_call.1} parent=5 // pred_check_branch
        %163 = sbr.rel (%p160) target = $region12
      $region11: #{tpu_custom_call.1} parent=5 // pred_region
        %s164 = ssub.s32 %s14, 1
        // Predicated region
        $region13: #{tpu_custom_call.1} parent=11 // pred_check
          %p165 = pneg %p61
        $region14: #{tpu_custom_call.1} parent=11 // pred_check_branch
          %167 = sbr.rel (%p165) target = $region16
        $region15: #{tpu_custom_call.1} parent=11 // pred_region
          _
        $region16: #{tpu_custom_call.1} parent=11 // pred_fallthru
          _
        // Predicated region
        $region17: #{tpu_custom_call.1} parent=11 // pred_check
          %p168 = pneg %p82
        $region18: #{tpu_custom_call.1} parent=11 // pred_check_branch
          %170 = sbr.rel (%p168) target = $region20
        $region19: #{tpu_custom_call.1} parent=11 // pred_region
          _
        $region20: #{tpu_custom_call.1} parent=11 // pred_fallthru
          _
        // Predicated region
        $region21: #{tpu_custom_call.1} parent=11 // pred_check
          %p171 = pneg %p103
        $region22: #{tpu_custom_call.1} parent=11 // pred_check_branch
          %173 = sbr.rel (%p171) target = $region24
        $region23: #{tpu_custom_call.1} parent=11 // pred_region
          _
        $region24: #{tpu_custom_call.1} parent=11 // pred_fallthru
          _
        // Predicated region
        $region25: #{tpu_custom_call.1} parent=11 // pred_check
          %p174 = pneg %p124
        $region26: #{tpu_custom_call.1} parent=11 // pred_check_branch
          %176 = sbr.rel (%p174) target = $region28
        $region27: #{tpu_custom_call.1} parent=11 // pred_region
          _
        $region28: #{tpu_custom_call.1} parent=11 // pred_fallthru
          _
      $region12: #{tpu_custom_call.1} parent=5 // pred_fallthru
        _
      %p177 = scmp.lt.s32.totalorder %s14, 2
      // Predicated region
      $region29: #{tpu_custom_call.1} parent=5 // pred_check
        %p178 = pneg %p177
      $region30: #{tpu_custom_call.1} parent=5 // pred_check_branch
        %180 = sbr.rel (%p178) target = $region32
      $region31: #{tpu_custom_call.1} parent=5 // pred_region
        // Predicated region
        $region33: #{tpu_custom_call.1} parent=31 // pred_check
          %p181 = pneg %p34
        $region34: #{tpu_custom_call.1} parent=31 // pred_check_branch
          %183 = sbr.rel (%p181) target = $region36
        $region35: #{tpu_custom_call.1} parent=31 // pred_region
          %p184 = scmp.lt.s32.totalorder %s14, 1
          %s185 = scalar_select %p184, %s14, 1
          %s186 = smul.addr %s185, 3
          %s187 = smul.addr %s186, 4
          %s188 = scalar_lea.vmem %s0, %s187
        $region36: #{tpu_custom_call.1} parent=31 // pred_fallthru
          _
      $region32: #{tpu_custom_call.1} parent=5 // pred_fallthru
        _
      %p189 = scmp.le.s32.totalorder 1, %s14
      %p190 = scmp.lt.s32.totalorder %s14, 3
      %p191 = pnand %p189, %p190
      %p192 = pneg %p191
      // Predicated region
      $region37: #{tpu_custom_call.1} parent=5 // pred_check
        _
      $region38: #{tpu_custom_call.1} parent=5 // pred_check_branch
        %194 = sbr.rel (%p191) target = $region40
      $region39: #{tpu_custom_call.1} parent=5 // pred_region
        %s195 = ssub.s32 %s14, 1
        %p196 = scmp.lt.s32.totalorder %s19, 1
        %s197 = scalar_select %p196, %s19, 1
        %s198 = smul.addr %s197, 3
        %s199 = smul.addr %s198, 4
        %s200 = scalar_lea.vmem %s0, %s199
        %p201 = pneg %p40
        %p202 = pneg %p37
        %p203 = pneg %p61
        %p204 = pneg %p58
        %p205 = pneg %p82
        %p206 = pneg %p79
        %p207 = pneg %p103
        %p208 = pneg %p100
        %p209 = pneg %p124
        %p210 = pneg %p121
        %p211 = pneg %p150
        %p212 = pneg %p147
        %s213 = sand.u32 %s137, 1
        %s214 = scalar_lea.sflag [#allocation3], %s213
        %s215 = sand.u32 %s137, 1
        %s216 = smul.addr %s215, 24
        %s217 = scalar_lea.vmem [#allocation2], %s216
        %p218 = scmp.lt.s32.totalorder %s19, 1
        %s219 = scalar_select %p218, %s19, 1
        %s220 = smul.addr %s219, 3
        %s221 = smul.addr %s220, 4
        %s222 = scalar_lea.vmem %s0, %s221
        %v223 = vld [vmem:[%s1] sm:$0xf]
        %v224 = vld [vmem:[%s222] sm:$0xff]
        %v225 = vld [vmem:[%s222 + $0x8] sm:$0xf]
        %227 = vset.pattern.permute.xlu0 0
        %228 = vperm.xlu0 %227, %v223
        %v229 = vpop.permute.xlu0 %228
        %v232 = vcombine.high %v224, %v224
        %v234 = vmul.f32 %v229, %v224
        %v235 = vmul.f32 %v229, %v232
        %v236 = vmul.f32 %v229, %v225
        %v237 = vadd.f32 %v234, 0.0
        %v238 = vadd.f32 %v235, 0.0
        %v239 = vadd.f32 %v236, 0.0
        %s240 = scalar_lea.vmem %s1, 4
        %v241 = vld [vmem:[%s240] sm:$0xf]
        %v242 = vld [vmem:[%s222] sm:$0xff]
        %v243 = vld [vmem:[%s222 + $0x8] sm:$0xf]
        %245 = vset.pattern.permute.xlu0 0
        %246 = vperm.xlu0 %245, %v241
        %v247 = vpop.permute.xlu0 %246
        %v251 = vcombine.high %v242, %v242
        %252 = vrot.lane.b32.xlu0 %v242, 127
        %v253 = vpop.permute.xlu0 %252
        %254 = vrot.lane.b32.xlu0 %v251, 127
        %v255 = vpop.permute.xlu0 %254
        %256 = vrot.lane.b32.xlu0 %v243, 127
        %v257 = vpop.permute.xlu0 %256
        %vm258 = vcmask 1039360
        %v259 = vsel %vm258, %v253, %v255
        %v260 = vsel %vm258, %v255, %v257
        %v264 = vmul.f32 %v247, %v259
        %v265 = vmul.f32 %v247, %v260
        %v266 = vmul.f32 %v247, %v257
        %v267 = vadd.f32 %v237, %v264
        %v268 = vadd.f32 %v238, %v265
        %v269 = vadd.f32 %v239, %v266
        %s270 = scalar_lea.vmem %s1, 8
        %v271 = vld [vmem:[%s270] sm:$0xf]
        %v272 = vld [vmem:[%s222] sm:$0xff]
        %v273 = vld [vmem:[%s222 + $0x8] sm:$0xf]
        %275 = vset.pattern.permute.xlu0 0
        %276 = vperm.xlu0 %275, %v271
        %v277 = vpop.permute.xlu0 %276
        %v281 = vcombine.high %v272, %v272
        %282 = vrot.lane.b32.xlu0 %v272, 126
        %v283 = vpop.permute.xlu0 %282
        %284 = vrot.lane.b32.xlu0 %v281, 126
        %v285 = vpop.permute.xlu0 %284
        %286 = vrot.lane.b32.xlu0 %v273, 126
        %v287 = vpop.permute.xlu0 %286
        %vm288 = vcmask 1031168
        %v289 = vsel %vm288, %v283, %v285
        %v290 = vsel %vm288, %v285, %v287
        %v294 = vmul.f32 %v277, %v289
        %v295 = vmul.f32 %v277, %v290
        %v296 = vmul.f32 %v277, %v287
        %v297 = vadd.f32 %v267, %v294
        %v298 = vadd.f32 %v268, %v295
        %v299 = vadd.f32 %v269, %v296
        %s300 = scalar_lea.vmem %s1, 12
        %v301 = vld [vmem:[%s300] sm:$0xf]
        %v302 = vld [vmem:[%s222] sm:$0xff]
        %v303 = vld [vmem:[%s222 + $0x8] sm:$0xf]
        %305 = vset.pattern.permute.xlu0 0
        %306 = vperm.xlu0 %305, %v301
        %v307 = vpop.permute.xlu0 %306
        %v311 = vcombine.high %v302, %v302
        %312 = vrot.lane.b32.xlu0 %v302, 110
        %v313 = vpop.permute.xlu0 %312
        %314 = vrot.lane.b32.xlu0 %v311, 110
        %v315 = vpop.permute.xlu0 %314
        %316 = vrot.lane.b32.xlu0 %v303, 110
        %v317 = vpop.permute.xlu0 %316
        %vm318 = vcmask 900096
        %v319 = vsel %vm318, %v313, %v315
        %v320 = vsel %vm318, %v315, %v317
        %v324 = vmul.f32 %v307, %v319
        %v325 = vmul.f32 %v307, %v320
        %v326 = vmul.f32 %v307, %v317
        %v327 = vadd.f32 %v297, %v324
        %v328 = vadd.f32 %v298, %v325
        %v329 = vadd.f32 %v299, %v326
        %s330 = scalar_lea.vmem %s1, 16
        %v331 = vld [vmem:[%s330] sm:$0xf]
        %v332 = vld [vmem:[%s222] sm:$0xff]
        %v333 = vld [vmem:[%s222 + $0x8] sm:$0xf]
        %335 = vset.pattern.permute.xlu0 0
        %336 = vperm.xlu0 %335, %v331
        %v337 = vpop.permute.xlu0 %336
        %v341 = vcombine.high %v332, %v332
        %342 = vrot.lane.b32.xlu0 %v332, 109
        %v343 = vpop.permute.xlu0 %342
        %344 = vrot.lane.b32.xlu0 %v341, 109
        %v345 = vpop.permute.xlu0 %344
        %346 = vrot.lane.b32.xlu0 %v333, 109
        %v347 = vpop.permute.xlu0 %346
        %vm348 = vcmask 891904
        %v349 = vsel %vm348, %v343, %v345
        %v350 = vsel %vm348, %v345, %v347
        %v354 = vmul.f32 %v337, %v349
        %v355 = vmul.f32 %v337, %v350
        %v356 = vmul.f32 %v337, %v347
        %v357 = vadd.f32 %v327, %v354
        %v358 = vadd.f32 %v328, %v355
        %v359 = vadd.f32 %v329, %v356
        %s360 = scalar_lea.vmem %s1, 20
        %v361 = vld [vmem:[%s360] sm:$0xf]
        %v362 = vld [vmem:[%s222] sm:$0xff]
        %v363 = vld [vmem:[%s222 + $0x8] sm:$0xf]
        %365 = vset.pattern.permute.xlu0 0
        %366 = vperm.xlu0 %365, %v361
        %v367 = vpop.permute.xlu0 %366
        %v371 = vcombine.high %v362, %v362
        %372 = vrot.lane.b32.xlu0 %v362, 108
        %v373 = vpop.permute.xlu0 %372
        %374 = vrot.lane.b32.xlu0 %v371, 108
        %v375 = vpop.permute.xlu0 %374
        %376 = vrot.lane.b32.xlu0 %v363, 108
        %v377 = vpop.permute.xlu0 %376
        %vm378 = vcmask 883712
        %v379 = vsel %vm378, %v373, %v375
        %v380 = vsel %vm378, %v375, %v377
        %v384 = vmul.f32 %v367, %v379
        %v385 = vmul.f32 %v367, %v380
        %v386 = vmul.f32 %v367, %v377
        %v387 = vadd.f32 %v357, %v384
        %v388 = vadd.f32 %v358, %v385
        %v389 = vadd.f32 %v359, %v386
        %s390 = scalar_lea.vmem %s1, 24
        %v391 = vld [vmem:[%s390] sm:$0xf]
        %v392 = vld [vmem:[%s222] sm:$0xff]
        %v393 = vld [vmem:[%s222 + $0x8] sm:$0xf]
        %395 = vset.pattern.permute.xlu0 0
        %396 = vperm.xlu0 %395, %v391
        %v397 = vpop.permute.xlu0 %396
        %v401 = vcombine.high %v392, %v392
        %402 = vrot.lane.b32.xlu0 %v392, 92
        %v403 = vpop.permute.xlu0 %402
        %404 = vrot.lane.b32.xlu0 %v401, 92
        %v405 = vpop.permute.xlu0 %404
        %406 = vrot.lane.b32.xlu0 %v393, 92
        %v407 = vpop.permute.xlu0 %406
        %vm408 = vcmask 752640
        %v409 = vsel %vm408, %v403, %v405
        %v410 = vsel %vm408, %v405, %v407
        %v414 = vmul.f32 %v397, %v409
        %v415 = vmul.f32 %v397, %v410
        %v416 = vmul.f32 %v397, %v407
        %v417 = vadd.f32 %v387, %v414
        %v418 = vadd.f32 %v388, %v415
        %v419 = vadd.f32 %v389, %v416
        %s420 = scalar_lea.vmem %s1, 28
        %v421 = vld [vmem:[%s420] sm:$0xf]
        %v422 = vld [vmem:[%s222] sm:$0xff]
        %v423 = vld [vmem:[%s222 + $0x8] sm:$0xf]
        %425 = vset.pattern.permute.xlu0 0
        %426 = vperm.xlu0 %425, %v421
        %v427 = vpop.permute.xlu0 %426
        %v431 = vcombine.high %v422, %v422
        %432 = vrot.lane.b32.xlu0 %v422, 91
        %v433 = vpop.permute.xlu0 %432
        %434 = vrot.lane.b32.xlu0 %v431, 91
        %v435 = vpop.permute.xlu0 %434
        %436 = vrot.lane.b32.xlu0 %v423, 91
        %v437 = vpop.permute.xlu0 %436
        %vm438 = vcmask 744448
        %v439 = vsel %vm438, %v433, %v435
        %v440 = vsel %vm438, %v435, %v437
        %v444 = vmul.f32 %v427, %v439
        %v445 = vmul.f32 %v427, %v440
        %v446 = vmul.f32 %v427, %v437
        %v447 = vadd.f32 %v417, %v444
        %v448 = vadd.f32 %v418, %v445
        %v449 = vadd.f32 %v419, %v446
        %s450 = scalar_lea.vmem %s1, 32
        %v451 = vld [vmem:[%s450] sm:$0xf]
        %v452 = vld [vmem:[%s222] sm:$0xff]
        %v453 = vld [vmem:[%s222 + $0x8] sm:$0xf]
        %455 = vset.pattern.permute.xlu0 0
        %456 = vperm.xlu0 %455, %v451
        %v457 = vpop.permute.xlu0 %456
        %v461 = vcombine.high %v452, %v452
        %462 = vrot.lane.b32.xlu0 %v452, 90
        %v463 = vpop.permute.xlu0 %462
        %464 = vrot.lane.b32.xlu0 %v461, 90
        %v465 = vpop.permute.xlu0 %464
        %466 = vrot.lane.b32.xlu0 %v453, 90
        %v467 = vpop.permute.xlu0 %466
        %vm468 = vcmask 736256
        %v469 = vsel %vm468, %v463, %v465
        %v470 = vsel %vm468, %v465, %v467
        %v474 = vmul.f32 %v457, %v469
        %v475 = vmul.f32 %v457, %v470
        %v476 = vmul.f32 %v457, %v467
        %v477 = vadd.f32 %v447, %v474
        %v478 = vadd.f32 %v448, %v475
        %v479 = vadd.f32 %v449, %v476
        %v480 = vld [vmem:[%s2] sm:$0xf]
        %482 = vset.pattern.permute.xlu0 0
        %483 = vperm.xlu0 %482, %v480
        %v484 = vpop.permute.xlu0 %483
        %v486 = vadd.f32 %v477, %v484
        %v487 = vadd.f32 %v478, %v484
        %v488 = vadd.f32 %v479, %v484
        %v489 = vld [vmem:[%s3] sm:$0xff]
        %v490 = vld [vmem:[%s4] sm:$0xff]
        %492 = vset.pattern.permute.xlu0 0
        %493 = vperm.xlu0 %492, %v490
        %v494 = vpop.permute.xlu0 %493
        %vm496 = vcmask 31744
        %v498 = vsel %vm496, %v489, 0
        %vm500 = vcmask 1043456
        %v502 = vsel %vm500, %v486, 0
        %v505 = vsel %vm500, %v487, 0
        %v508 = vsel %vm500, %v488, 0
        %510 = vmatprep.subr.mxu0 %v505
        %511 = vmatpush1.msra.mxu0 %v502
        %512 = vmatprep.subr.mxu0 0.0
        %513 = vmatpush1.msra.mxu0 0.0
        %514 = vmatprep.subr.mxu0 0.0
        %515 = vmatpush1.msra.mxu0 0.0
        %516 = vmatprep.subr.mxu0 0.0
        %517 = vmatpush1.msra.mxu0 0.0
        %518 = vmatprep.subr.mxu0 0.0
        %519 = vmatpush1.msra.mxu0 0.0
        %520 = vmatprep.subr.mxu0 0.0
        %521 = vmatpush1.msra.mxu0 0.0
        %522 = vmatprep.subr.mxu0 0.0
        %523 = vmatpush1.msra.mxu0 0.0
        %524 = vmatprep.subr.mxu0 0.0
        %525 = vmatpush1.msra.mxu0 0.0
        %526 = vmatprep.subr.mxu0 0.0
        %527 = vmatpush1.msra.mxu0 0.0
        %528 = vmatprep.subr.mxu0 0.0
        %529 = vmatpush1.msra.mxu0 0.0
        %530 = vmatprep.subr.mxu0 0.0
        %531 = vmatpush1.msra.mxu0 0.0
        %532 = vmatprep.subr.mxu0 0.0
        %533 = vmatpush1.msra.mxu0 0.0
        %534 = vmatprep.subr.mxu0 0.0
        %535 = vmatpush1.msra.mxu0 0.0
        %536 = vmatprep.subr.mxu0 0.0
        %537 = vmatpush1.msra.mxu0 0.0
        %538 = vmatprep.subr.mxu0 0.0
        %539 = vmatpush1.msra.mxu0 0.0
        %540 = vmatprep.subr.mxu0 0.0
        %541 = vmatpush1.msra.mxu0 0.0
        %542 = vmatprep.subr.mxu0 0.0
        %543 = vmatpush1.msra.mxu0 0.0
        %544 = vmatprep.subr.mxu0 0.0
        %545 = vmatpush1.msra.mxu0 0.0
        %546 = vmatprep.subr.mxu0 0.0
        %547 = vmatpush1.msra.mxu0 0.0
        %548 = vmatprep.subr.mxu0 0.0
        %549 = vmatpush1.msra.mxu0 0.0
        %550 = vmatprep.subr.mxu0 0.0
        %551 = vmatpush1.msra.mxu0 0.0
        %552 = vmatprep.subr.mxu0 0.0
        %553 = vmatpush1.msra.mxu0 0.0
        %554 = vmatprep.subr.mxu0 0.0
        %555 = vmatpush1.msra.mxu0 0.0
        %556 = vmatprep.subr.mxu0 0.0
        %557 = vmatpush1.msra.mxu0 0.0
        %558 = vmatprep.subr.mxu0 0.0
        %559 = vmatpush1.msra.mxu0 0.0
        %560 = vmatprep.subr.mxu0 0.0
        %561 = vmatpush1.msra.mxu0 0.0
        %562 = vmatprep.subr.mxu0 0.0
        %563 = vmatpush1.msra.mxu0 0.0
        %564 = vmatprep.subr.mxu0 0.0
        %565 = vmatpush1.msra.mxu0 0.0
        %566 = vmatprep.subr.mxu0 0.0
        %567 = vmatpush1.msra.mxu0 0.0
        %568 = vmatprep.subr.mxu0 0.0
        %569 = vmatpush1.msra.mxu0 0.0
        %570 = vmatprep.subr.mxu0 0.0
        %571 = vmatpush1.msra.mxu0 0.0
        %572 = vmatprep.subr.mxu0 0.0
        %573 = vmatpush1.msra.mxu0 0.0
        %574 = vmatprep.mubr.f32.mxu0 0.0
        %575 = vmatmul.mubr.f32.gmra.mrb[0].mxu0 %v498
        %v576 = vpop.f32.mrb[0].mxu0
        %v577 = vadd.f32 %v494, %v576
        %v578 = vpop.f32.mrb[0].mxu0
        %v579 = vadd.f32 %v494, %v578
        %580 = vdwg.mxu0
        %581 = vmatprep.subr.mxu0 0.0
        %582 = vmatpush1.msra.mxu0 %v508
        %583 = vmatprep.subr.mxu0 0.0
        %584 = vmatpush1.msra.mxu0 0.0
        %585 = vmatprep.subr.mxu0 0.0
        %586 = vmatpush1.msra.mxu0 0.0
        %587 = vmatprep.subr.mxu0 0.0
        %588 = vmatpush1.msra.mxu0 0.0
        %589 = vmatprep.subr.mxu0 0.0
        %590 = vmatpush1.msra.mxu0 0.0
        %591 = vmatprep.subr.mxu0 0.0
        %592 = vmatpush1.msra.mxu0 0.0
        %593 = vmatprep.subr.mxu0 0.0
        %594 = vmatpush1.msra.mxu0 0.0
        %595 = vmatprep.subr.mxu0 0.0
        %596 = vmatpush1.msra.mxu0 0.0
        %597 = vmatprep.subr.mxu0 0.0
        %598 = vmatpush1.msra.mxu0 0.0
        %599 = vmatprep.subr.mxu0 0.0
        %600 = vmatpush1.msra.mxu0 0.0
        %601 = vmatprep.subr.mxu0 0.0
        %602 = vmatpush1.msra.mxu0 0.0
        %603 = vmatprep.subr.mxu0 0.0
        %604 = vmatpush1.msra.mxu0 0.0
        %605 = vmatprep.subr.mxu0 0.0
        %606 = vmatpush1.msra.mxu0 0.0
        %607 = vmatprep.subr.mxu0 0.0
        %608 = vmatpush1.msra.mxu0 0.0
        %609 = vmatprep.subr.mxu0 0.0
        %610 = vmatpush1.msra.mxu0 0.0
        %611 = vmatprep.subr.mxu0 0.0
        %612 = vmatpush1.msra.mxu0 0.0
        %613 = vmatprep.subr.mxu0 0.0
        %614 = vmatpush1.msra.mxu0 0.0
        %615 = vmatprep.subr.mxu0 0.0
        %616 = vmatpush1.msra.mxu0 0.0
        %617 = vmatprep.subr.mxu0 0.0
        %618 = vmatpush1.msra.mxu0 0.0
        %619 = vmatprep.subr.mxu0 0.0
        %620 = vmatpush1.msra.mxu0 0.0
        %621 = vmatprep.subr.mxu0 0.0
        %622 = vmatpush1.msra.mxu0 0.0
        %623 = vmatprep.subr.mxu0 0.0
        %624 = vmatpush1.msra.mxu0 0.0
        %625 = vmatprep.subr.mxu0 0.0
        %626 = vmatpush1.msra.mxu0 0.0
        %627 = vmatprep.subr.mxu0 0.0
        %628 = vmatpush1.msra.mxu0 0.0
        %629 = vmatprep.subr.mxu0 0.0
        %630 = vmatpush1.msra.mxu0 0.0
        %631 = vmatprep.subr.mxu0 0.0
        %632 = vmatpush1.msra.mxu0 0.0
        %633 = vmatprep.subr.mxu0 0.0
        %634 = vmatpush1.msra.mxu0 0.0
        %635 = vmatprep.subr.mxu0 0.0
        %636 = vmatpush1.msra.mxu0 0.0
        %637 = vmatprep.subr.mxu0 0.0
        %638 = vmatpush1.msra.mxu0 0.0
        %639 = vmatprep.subr.mxu0 0.0
        %640 = vmatpush1.msra.mxu0 0.0
        %641 = vmatprep.subr.mxu0 0.0
        %642 = vmatpush1.msra.mxu0 0.0
        %643 = vmatprep.subr.mxu0 0.0
        %644 = vmatpush1.msra.mxu0 0.0
        %645 = vmatprep.mubr.f32.mxu0 0.0
        %646 = vmatmul.mubr.f32.gmra.mrb[0].mxu0 %v498
        %v647 = vpop.f32.mrb[0].mxu0
        %v648 = vadd.f32 %v494, %v647
        %v649 = vpop.f32.mrb[0].mxu0
        %650 = vdwg.mxu0
        %651 = vst [vmem:[%s217] sm:$0xff] %v577
        %652 = vst [vmem:[%s217 + $0x8] sm:$0xff] %v579
        %vm653 = vcmask 261120
        %654 = vst.msk [vmem:[%s217 + $0x10] sm:$0xff] %vm653, %v648
        %s655 = sand.u32 %s137, 1
        %s656 = scalar_lea.sflag [#allocation3], %s655
        %s657 = sand.u32 %s137, 1
        %s658 = smul.addr %s657, 24
        %s659 = scalar_lea.vmem [#allocation2], %s658
        // Predicated region
        $region41: #{tpu_custom_call.1} parent=39 // pred_check
          %p660 = pneg %p147
        $region42: #{tpu_custom_call.1} parent=39 // pred_check_branch
          %662 = sbr.rel (%p660) target = $region44
        $region43: #{tpu_custom_call.1} parent=39 // pred_region
          %s664 = ssub.s32 384, 384
          %665 = vsyncadd %s656, %s664
          %s666 = smul.addr %s19, 3
          %s667 = smul.addr %s666, 128
          %s668 = scalar_lea.hbm %s5, %s667
          %s670 = sshll.u32 %s659, 4
          %s671 = int_to_ptr.vmem [resolvable:$true] %s670
          %673 = dma.vmem_to_hbm [thread:$0]  %s671, 384, %s668, %s656
        $region44: #{tpu_custom_call.1} parent=39 // pred_fallthru
          _
      $region40: #{tpu_custom_call.1} parent=5 // pred_fallthru
        _
      %p674 = scmp.le.s32.totalorder 2, %s14
      // Predicated region
      $region45: #{tpu_custom_call.1} parent=5 // pred_check
        %p675 = pneg %p674
      $region46: #{tpu_custom_call.1} parent=5 // pred_check_branch
        %677 = sbr.rel (%p675) target = $region48
      $region47: #{tpu_custom_call.1} parent=5 // pred_region
        %s678 = ssub.s32 %s14, 2
        // Predicated region
        $region49: #{tpu_custom_call.1} parent=47 // pred_check
          %p679 = pneg %p153
        $region50: #{tpu_custom_call.1} parent=47 // pred_check_branch
          %681 = sbr.rel (%p679) target = $region52
        $region51: #{tpu_custom_call.1} parent=47 // pred_region
          %s682 = sand.u32 %s138, 1
          %s683 = scalar_lea.sflag [#allocation3], %s682
          %s684 = sand.u32 %s138, 1
          %s685 = smul.addr %s684, 24
          %s686 = scalar_lea.vmem [#allocation2], %s685
          %687 = dma.done %s683, 384
        $region52: #{tpu_custom_call.1} parent=47 // pred_fallthru
          _
      $region48: #{tpu_custom_call.1} parent=5 // pred_fallthru
        _
    $region6: #{tpu_custom_call.1} parent=1 // loop_footer
      %s18 = sadd.s32 1, %s14
    $region7: #{tpu_custom_call.1} parent=1 // loop_footer_branch
      %13 = sbr.rel target = $region3
    $region8: #{tpu_custom_call.1} parent=1 // loop_exit
      _
    %688 = vsyncpa [#allocation3], 1
    %s689 = scalar_lea.sflag [#allocation3], 1
    %690 = vsyncpa %s689, 1

</llo_original>
